<compile_context>
chip_gen: v7x
topology: tpu7x:2x2x1
jax: 0.10.0
libtpu: 0.0.40
codegen_flags: <defaults>
</compile_context>

<pallas_src>
import jax
import jax.numpy as jnp
from jax.experimental import pallas as pl
from jax.experimental.pallas import tpu as pltpu

NUM_HEADS = 10
NUM_CLASSES = 3
_OUT_PAD = 128          # lane-dense output width (>= NUM_HEADS * NUM_CLASSES)
_GRID_BT = 512          # batch tile used once B is large enough to pipeline


def _fused_kernel(x_ref, w1_ref, b1_ref, w2_ref, b2_ref, o_ref):
    # x_ref : (Bt, D)          w1_ref: (D, 10*H)      b1_ref: (1, 10*H)
    # w2_ref: (10*H, 128)      b2_ref: (1, 128)       o_ref : (Bt, 128)
    x = x_ref[...]
    h = jnp.dot(x, w1_ref[...], preferred_element_type=jnp.float32) + b1_ref[...]
    h = jnp.maximum(h, 0.0)                                   # ReLU (VPU)
    o = jnp.dot(h, w2_ref[...], preferred_element_type=jnp.float32) + b2_ref[...]
    o_ref[...] = o.astype(o_ref.dtype)


def pack_params(params):
    """One-time layout plumbing — call ONCE, outside the per-forward hot path.

    Stacks the 10 heads along the lane dimension, builds the block-diagonal
    second-stage weight, and zero-pads the output stage to 128 lanes so the
    kernel's stores are full-lane (unmasked) vst.
    """
    w1, b1, w2, b2 = params["w1"], params["b1"], params["w2"], params["b2"]
    n, d, h = w1.shape                                        # (10, D, H)
    c = w2.shape[-1]                                          # 3
    # (10, D, H) -> (D, 10*H): column j = head*H + k
    w1_f = jnp.transpose(w1, (1, 0, 2)).reshape(d, n * h)
    b1_f = b1.reshape(1, n * h)
    # Block-diagonal (10*H, 10*3): rows (head, k), cols (head, c)
    eye = jnp.eye(n, dtype=w2.dtype)                          # (10, 10)
    w2_bd = (w2[:, :, None, :] * eye[:, None, :, None]).reshape(n * h, n * c)
    # Lane-dense padding 30 -> 128 (MXU pushes >=128 lanes anyway; zero cols
    # are free and the kernel's output store becomes unmasked).
    w2_p = jnp.zeros((n * h, _OUT_PAD), w2_bd.dtype).at[:, : n * c].set(w2_bd)
    b2_p = jnp.zeros((1, _OUT_PAD), b2.dtype).at[:, : n * c].set(b2.reshape(1, n * c))
    return {"w1": w1_f, "b1": b1_f, "w2": w2_p, "b2": b2_p}


@jax.jit
def polarity_classifier_forward(x, packed):
    """Replicates PolarityClassifier.forward (eval mode, dropout = identity).

    x:       (B, D) float32  (2-D input path of the PyTorch module)
    packed:  output of pack_params(params)  (packed once, reused every call)
    returns: (B, 10, 3)
    """
    w1_f, b1_f, w2_p, b2_p = packed["w1"], packed["b1"], packed["w2"], packed["b2"]
    B, D = x.shape
    NH = w1_f.shape[-1]                                       # 10*H
    NCP = w2_p.shape[-1]                                      # 128 (padded)

    cost = pl.CostEstimate(
        flops=2 * B * (D * NH + NH * NCP),
        bytes_accessed=4 * (B * D + D * NH + NH + NH * NCP + NCP + B * NCP),
        transcendentals=0,
    )

    use_grid = (B >= 2 * _GRID_BT) and (B % _GRID_BT == 0)
    if use_grid:
        # Pipeline x/out DMAs behind the matmuls; weights are full-array
        # blocks, DMA'd once and kept VMEM-resident across grid steps.
        # "parallel" lets the two TensorCores on v7x split the batch.
        out = pl.pallas_call(
            _fused_kernel,
            out_shape=jax.ShapeDtypeStruct((B, NCP), x.dtype),
            grid=(B // _GRID_BT,),
            in_specs=[
                pl.BlockSpec((_GRID_BT, D), lambda i: (i, 0)),   # x
                pl.BlockSpec((D, NH), lambda i: (0, 0)),         # packed W1
                pl.BlockSpec((1, NH), lambda i: (0, 0)),         # packed b1
                pl.BlockSpec((NH, NCP), lambda i: (0, 0)),       # block-diag W2 (padded)
                pl.BlockSpec((1, NCP), lambda i: (0, 0)),        # packed b2 (padded)
            ],
            out_specs=pl.BlockSpec((_GRID_BT, NCP), lambda i: (i, 0)),
            compiler_params=pltpu.CompilerParams(
                dimension_semantics=("parallel",)),
            cost_estimate=cost,
        )(x, w1_f, b1_f, w2_p, b2_p)                          # (B, 128)
    else:
        # Small-batch path: single invocation, no grid — every operand is one
        # full-array VMEM block, DMA'd exactly once.
        out = pl.pallas_call(
            _fused_kernel,
            out_shape=jax.ShapeDtypeStruct((B, NCP), x.dtype),
            in_specs=[
                pl.BlockSpec((B, D), lambda: (0, 0)),            # x
                pl.BlockSpec((D, NH), lambda: (0, 0)),           # packed W1
                pl.BlockSpec((1, NH), lambda: (0, 0)),           # packed b1
                pl.BlockSpec((NH, NCP), lambda: (0, 0)),         # block-diag W2 (padded)
                pl.BlockSpec((1, NCP), lambda: (0, 0)),          # packed b2 (padded)
            ],
            out_specs=pl.BlockSpec((B, NCP), lambda: (0, 0)),
            cost_estimate=cost,
        )(x, w1_f, b1_f, w2_p, b2_p)                          # (B, 128)

    # Slice off the padding lanes and reshape to the PyTorch (B, 10, 3)
    # layout (ndim == 2 path); both fold for free under jit.
    return out[:, : NUM_HEADS * NUM_CLASSES].reshape(B, NUM_HEADS, NUM_CLASSES)


def init_params(key, input_size, hidden_size=64):
    """Deterministic init mimicking nn.Linear defaults (uniform +/- 1/sqrt(fan_in))."""
    k1, k2, k3, k4 = jax.random.split(key, 4)
    lim1 = 1.0 / jnp.sqrt(jnp.float32(input_size))
    lim2 = 1.0 / jnp.sqrt(jnp.float32(hidden_size))
    return {
        "w1": jax.random.uniform(k1, (NUM_HEADS, input_size, hidden_size),
                                 jnp.float32, -lim1, lim1),
        "b1": jax.random.uniform(k2, (NUM_HEADS, hidden_size),
                                 jnp.float32, -lim1, lim1),
        "w2": jax.random.uniform(k3, (NUM_HEADS, hidden_size, NUM_CLASSES),
                                 jnp.float32, -lim2, lim2),
        "b2": jax.random.uniform(k4, (NUM_HEADS, NUM_CLASSES),
                                 jnp.float32, -lim2, lim2),
    }


def _reference_forward(x, params):
    # Pure-JAX reference of the same math (eval-mode dropout).
    h = jnp.maximum(jnp.einsum("bd,ndh->nbh", x, params["w1"])
                    + params["b1"][:, None, :], 0.0)
    o = jnp.einsum("nbh,nhc->nbc", h, params["w2"]) + params["b2"][:, None, :]
    return jnp.transpose(o, (1, 0, 2))                        # (B, 10, 3)


if __name__ == "__main__":
    B, D, H = 8, 32, 64
    key = jax.random.PRNGKey(0)
    k_x, k_p = jax.random.split(key)
    x = jax.random.normal(k_x, (B, D), dtype=jnp.float32)
    params = init_params(k_p, input_size=D, hidden_size=H)

    # Pack ONCE (outside the hot path / jitted forward).
    packed = jax.tree.map(jax.block_until_ready, pack_params(params))

    out = polarity_classifier_forward(x, packed)
    out = jax.block_until_ready(out)

    ref = _reference_forward(x, params)
    assert out.shape == (B, NUM_HEADS, NUM_CLASSES), out.shape
    assert jnp.allclose(out, ref, atol=1e-4, rtol=1e-4), "mismatch vs reference"
    print("KERNEL_OK")
</pallas_src>

<mosaic_0001>
module attributes {stable_mosaic.version = 11 : i64} {
  func.func @_fused_kernel(%arg0: memref<8x32xf32, #tpu.memory_space<vmem>>, %arg1: memref<32x640xf32, #tpu.memory_space<vmem>>, %arg2: memref<1x640xf32, #tpu.memory_space<vmem>>, %arg3: memref<640x128xf32, #tpu.memory_space<vmem>>, %arg4: memref<1x128xf32, #tpu.memory_space<vmem>>, %arg5: memref<8x128xf32, #tpu.memory_space<vmem>>) attributes {dimension_semantics = [], scalar_prefetch = 0 : i64, scratch_operands = 0 : i64, tpu.core_type = #tpu.core_type<tc>} {
    %c0 = arith.constant 0 : index
    %c0_0 = arith.constant 0 : index
    %0 = vector.load %arg0[%c0, %c0_0] : memref<8x32xf32, #tpu.memory_space<vmem>>, vector<8x32xf32>
    %c0_1 = arith.constant 0 : index
    %c0_2 = arith.constant 0 : index
    %1 = vector.load %arg1[%c0_1, %c0_2] : memref<32x640xf32, #tpu.memory_space<vmem>>, vector<32x640xf32>
    %cst = arith.constant dense<0.000000e+00> : vector<8x640xf32>
    %2 = tpu.matmul %0, %1, %cst {dimension_numbers = #tpu.dot_dimension_numbers<[1], [0], [0], [1], [0, 0, 1, 1], [], []>} : vector<8x32xf32>, vector<32x640xf32>, vector<8x640xf32> -> vector<8x640xf32>
    %c0_3 = arith.constant 0 : index
    %c0_4 = arith.constant 0 : index
    %3 = vector.load %arg2[%c0_3, %c0_4] : memref<1x640xf32, #tpu.memory_space<vmem>>, vector<1x640xf32>
    %4 = vector.broadcast %3 : vector<1x640xf32> to vector<8x640xf32>
    %5 = arith.addf %2, %4 : vector<8x640xf32>
    %cst_5 = arith.constant 0.000000e+00 : f32
    %6 = vector.broadcast %cst_5 : f32 to vector<8x640xf32>
    %7 = arith.maximumf %5, %6 : vector<8x640xf32>
    %c0_6 = arith.constant 0 : index
    %c0_7 = arith.constant 0 : index
    %8 = vector.load %arg3[%c0_6, %c0_7] : memref<640x128xf32, #tpu.memory_space<vmem>>, vector<640x128xf32>
    %cst_8 = arith.constant dense<0.000000e+00> : vector<8x128xf32>
    %9 = tpu.matmul %7, %8, %cst_8 {dimension_numbers = #tpu.dot_dimension_numbers<[1], [0], [0], [1], [0, 0, 1, 1], [], []>} : vector<8x640xf32>, vector<640x128xf32>, vector<8x128xf32> -> vector<8x128xf32>
    %c0_9 = arith.constant 0 : index
    %c0_10 = arith.constant 0 : index
    %10 = vector.load %arg4[%c0_9, %c0_10] : memref<1x128xf32, #tpu.memory_space<vmem>>, vector<1x128xf32>
    %11 = vector.broadcast %10 : vector<1x128xf32> to vector<8x128xf32>
    %12 = arith.addf %9, %11 : vector<8x128xf32>
    %c0_11 = arith.constant 0 : index
    %c0_12 = arith.constant 0 : index
    %13 = vector.load %arg5[%c0_11, %c0_12] : memref<8x128xf32, #tpu.memory_space<vmem>>, vector<8x128xf32>
    tpu.vector_store %arg5[%c0_11, %c0_12], %12 {strides = array<i32>} : memref<8x128xf32, #tpu.memory_space<vmem>>, vector<8x128xf32>,
    return
  }
}

</mosaic_0001>

<llo_original>
// kernel: polarity_classifier_forward.1
$region0: #{polarity_classifier_forward.1}
  #allocation0 [shape = 'u32[]', space=smem, size = 0x4, offset = 0x4, fixed_abs, tag = 'smem constant byte address 0x4 - core index']
  #allocation1 [shape = 'u32[144,128]{1,0:T(1,128)}', space=vmem, size = 0x12000, scoped, tag = 'internal scratch']
  %s0 = inlined_call_operand.hbm [shape: f32[8,32], index: 0, kind: input, shape index: {}]
  %s1 = inlined_call_operand.hbm [shape: f32[32,640], index: 1, kind: input, shape index: {}]
  %s2 = inlined_call_operand.hbm [shape: f32[1,640], index: 2, kind: input, shape index: {}]
  %s3 = inlined_call_operand.hbm [shape: f32[640,128], index: 3, kind: input, shape index: {}]
  %s4 = inlined_call_operand.vmem [shape: f32[1,128], index: 4, kind: input, shape index: {}]
  %s5 = inlined_call_operand.vmem [shape: f32[8,128], index: 5, kind: output, shape index: {}]
  %s6 = sld [smem:[#allocation0]]
  $region46: #{polarity_classifier_forward.1} parent=0
    _
  %s8 = ssub.s32 1, %s6
  %s9 = scalar_select 0, %s8, %s6
  $region1: #{polarity_classifier_forward.1} parent=0
    #allocation2 [shape = 'u8[4096]{0}', space=vmem, size = 0x1000, scoped, tag = 'input window, operand 0, single buffered']
    #allocation3 [shape = 's32[1]{0}', space=sflag, size = 0x4, scoped, tag = 'scoped memory for polarity_classifier_forward.1']
    #allocation4 [shape = 'u8[81920]{0}', space=vmem, size = 0x14000, scoped, tag = 'input window, operand 1, single buffered']
    #allocation5 [shape = 's32[1]{0}', space=sflag, size = 0x4, scoped, tag = 'scoped memory for polarity_classifier_forward.1']
    #allocation6 [shape = 'u8[2560]{0}', space=vmem, size = 0xc00, scoped, tag = 'input window, operand 2, single buffered']
    #allocation7 [shape = 'u8[327680]{0}', space=vmem, size = 0x50000, scoped, tag = 'input window, operand 3, single buffered']
    #allocation8 [shape = 's32[1]{0}', space=sflag, size = 0x4, scoped, tag = 'scoped memory for polarity_classifier_forward.1']
    %10 = vsyncpa [#allocation3], 0
    %11 = vsyncpa [#allocation5], 0
    %12 = vsyncpa [#allocation8], 0
    // Predicated region
    $region2: #{polarity_classifier_forward.1} parent=1 // pred_check
      _
    $region3: #{polarity_classifier_forward.1} parent=1 // pred_check_branch
      %14 = sbr.rel (0) target = $region5
    $region4: #{polarity_classifier_forward.1} parent=1 // pred_region
      %s16 = ssub.s32 128, 128
      %17 = vsyncadd [#allocation3], %s16
      %s19 = sshll.u32 [#allocation2], 4
      %s20 = int_to_ptr.vmem [resolvable:$true] %s19
      %22 = dma.hbm_to_vmem [thread:$0]  %s0, 128, %s20, [#allocation3]
    $region5: #{polarity_classifier_forward.1} parent=1 // pred_fallthru
      _
    // Predicated region
    $region6: #{polarity_classifier_forward.1} parent=1 // pred_check
      _
    $region7: #{polarity_classifier_forward.1} parent=1 // pred_check_branch
      %24 = sbr.rel (0) target = $region9
    $region8: #{polarity_classifier_forward.1} parent=1 // pred_region
      %s26 = ssub.s32 2560, 2560
      %27 = vsyncadd [#allocation5], %s26
      %s28 = sshll.u32 [#allocation4], 4
      %s29 = int_to_ptr.vmem [resolvable:$true] %s28
      %34 = dma.hbm_to_vmem [thread:$0]  %s1, 2560, %s29, [#allocation5], 640, 640, 40
    $region9: #{polarity_classifier_forward.1} parent=1 // pred_fallthru
      _
    // Predicated region
    $region10: #{polarity_classifier_forward.1} parent=1 // pred_check
      _
    $region11: #{polarity_classifier_forward.1} parent=1 // pred_check_branch
      %36 = sbr.rel (0) target = $region13
    $region12: #{polarity_classifier_forward.1} parent=1 // pred_region
      %s38 = ssub.s32 80, 80
      %39 = vsyncadd [#allocation5], %s38
      %s41 = sshll.u32 [#allocation6], 4
      %s42 = int_to_ptr.vmem [resolvable:$true] %s41
      %44 = dma.hbm_to_vmem [thread:$0]  %s2, 80, %s42, [#allocation5]
    $region13: #{polarity_classifier_forward.1} parent=1 // pred_fallthru
      _
    // Predicated region
    $region14: #{polarity_classifier_forward.1} parent=1 // pred_check
      _
    $region15: #{polarity_classifier_forward.1} parent=1 // pred_check_branch
      %46 = sbr.rel (0) target = $region17
    $region16: #{polarity_classifier_forward.1} parent=1 // pred_region
      %s48 = ssub.s32 10240, 10240
      %49 = vsyncadd [#allocation8], %s48
      %s50 = sshll.u32 [#allocation7], 4
      %s51 = int_to_ptr.vmem [resolvable:$true] %s50
      %56 = dma.hbm_to_vmem [thread:$0]  %s3, 10240, %s51, [#allocation8], 128, 128, 8
    $region17: #{polarity_classifier_forward.1} parent=1 // pred_fallthru
      _
    // Predicated region
    $region18: #{polarity_classifier_forward.1} parent=1 // pred_check
      _
    $region19: #{polarity_classifier_forward.1} parent=1 // pred_check_branch
      %58 = sbr.rel (0) target = $region21
    $region20: #{polarity_classifier_forward.1} parent=1 // pred_region
      _
    $region21: #{polarity_classifier_forward.1} parent=1 // pred_fallthru
      _
    // Predicated region
    $region22: #{polarity_classifier_forward.1} parent=1 // pred_check
      _
    $region23: #{polarity_classifier_forward.1} parent=1 // pred_check_branch
      %60 = sbr.rel (0) target = $region25
    $region24: #{polarity_classifier_forward.1} parent=1 // pred_region
      %61 = dma.done [#allocation3], 128
    $region25: #{polarity_classifier_forward.1} parent=1 // pred_fallthru
      _
    // Predicated region
    $region26: #{polarity_classifier_forward.1} parent=1 // pred_check
      _
    $region27: #{polarity_classifier_forward.1} parent=1 // pred_check_branch
      %63 = sbr.rel (0) target = $region29
    $region28: #{polarity_classifier_forward.1} parent=1 // pred_region
      %64 = dma.done [#allocation5], 2560
    $region29: #{polarity_classifier_forward.1} parent=1 // pred_fallthru
      _
    // Predicated region
    $region30: #{polarity_classifier_forward.1} parent=1 // pred_check
      _
    $region31: #{polarity_classifier_forward.1} parent=1 // pred_check_branch
      %66 = sbr.rel (0) target = $region33
    $region32: #{polarity_classifier_forward.1} parent=1 // pred_region
      %67 = dma.done [#allocation5], 80
    $region33: #{polarity_classifier_forward.1} parent=1 // pred_fallthru
      _
    // Predicated region
    $region34: #{polarity_classifier_forward.1} parent=1 // pred_check
      _
    $region35: #{polarity_classifier_forward.1} parent=1 // pred_check_branch
      %69 = sbr.rel (0) target = $region37
    $region36: #{polarity_classifier_forward.1} parent=1 // pred_region
      %70 = dma.done [#allocation8], 10240
    $region37: #{polarity_classifier_forward.1} parent=1 // pred_fallthru
      _
    %v71 = vld [vmem:[#allocation2] sm:$0xff]
    %v72 = vld [vmem:[#allocation4] sm:$0xff]
    %v73 = vld [vmem:[#allocation4 + $0x8] sm:$0xff]
    %v74 = vld [vmem:[#allocation4 + $0x10] sm:$0xff]
    %v75 = vld [vmem:[#allocation4 + $0x18] sm:$0xff]
    %v76 = vld [vmem:[#allocation4 + $0x20] sm:$0xff]
    %v77 = vld [vmem:[#allocation4 + $0x28] sm:$0xff]
    %v78 = vld [vmem:[#allocation4 + $0x30] sm:$0xff]
    %v79 = vld [vmem:[#allocation4 + $0x38] sm:$0xff]
    %v80 = vld [vmem:[#allocation4 + $0x40] sm:$0xff]
    %v81 = vld [vmem:[#allocation4 + $0x48] sm:$0xff]
    %v82 = vld [vmem:[#allocation4 + $0x50] sm:$0xff]
    %v83 = vld [vmem:[#allocation4 + $0x58] sm:$0xff]
    %v84 = vld [vmem:[#allocation4 + $0x60] sm:$0xff]
    %v85 = vld [vmem:[#allocation4 + $0x68] sm:$0xff]
    %v86 = vld [vmem:[#allocation4 + $0x70] sm:$0xff]
    %v87 = vld [vmem:[#allocation4 + $0x78] sm:$0xff]
    %v88 = vld [vmem:[#allocation4 + $0x80] sm:$0xff]
    %v89 = vld [vmem:[#allocation4 + $0x88] sm:$0xff]
    %v90 = vld [vmem:[#allocation4 + $0x90] sm:$0xff]
    %v91 = vld [vmem:[#allocation4 + $0x98] sm:$0xff]
    %v92 = vld [vmem:[#allocation6] sm:$0x1f]
    %v94 = vlaneseq
    %v95 = vshrl.u32 %v94, 7
    %v96 = vsub.s32 0, %v95
    %v97 = vrot.slane %v92, %v96
    %v98 = vlaneseq
    %v99 = vshrl.u32 %v98, 7
    %v100 = vsub.s32 1, %v99
    %v101 = vrot.slane %v92, %v100
    %v102 = vlaneseq
    %v103 = vshrl.u32 %v102, 7
    %v104 = vsub.s32 2, %v103
    %v105 = vrot.slane %v92, %v104
    %v106 = vlaneseq
    %v107 = vshrl.u32 %v106, 7
    %v108 = vsub.s32 3, %v107
    %v109 = vrot.slane %v92, %v108
    %v110 = vlaneseq
    %v111 = vshrl.u32 %v110, 7
    %v112 = vsub.s32 4, %v111
    %v113 = vrot.slane %v92, %v112
    %vm119 = vcmask 261120
    %v121 = vsel %vm119, %v71, 0
    %123 = vmatprep.subr.mxu0 %v73
    %124 = vmatpush1.msra.mxu0 %v72
    %125 = vmatprep.subr.mxu0 %v78
    %126 = vmatpush1.msra.mxu0 %v77
    %127 = vmatprep.subr.mxu0 %v83
    %128 = vmatpush1.msra.mxu0 %v82
    %129 = vmatprep.subr.mxu0 %v88
    %130 = vmatpush1.msra.mxu0 %v87
    %131 = vmatprep.subr.mxu0 0.0
    %132 = vmatpush1.msra.mxu0 0.0
    %133 = vmatprep.subr.mxu0 0.0
    %134 = vmatpush1.msra.mxu0 0.0
    %135 = vmatprep.subr.mxu0 0.0
    %136 = vmatpush1.msra.mxu0 0.0
    %137 = vmatprep.subr.mxu0 0.0
    %138 = vmatpush1.msra.mxu0 0.0
    %139 = vmatprep.subr.mxu0 0.0
    %140 = vmatpush1.msra.mxu0 0.0
    %141 = vmatprep.subr.mxu0 0.0
    %142 = vmatpush1.msra.mxu0 0.0
    %143 = vmatprep.subr.mxu0 0.0
    %144 = vmatpush1.msra.mxu0 0.0
    %145 = vmatprep.subr.mxu0 0.0
    %146 = vmatpush1.msra.mxu0 0.0
    %147 = vmatprep.subr.mxu0 0.0
    %148 = vmatpush1.msra.mxu0 0.0
    %149 = vmatprep.subr.mxu0 0.0
    %150 = vmatpush1.msra.mxu0 0.0
    %151 = vmatprep.subr.mxu0 0.0
    %152 = vmatpush1.msra.mxu0 0.0
    %153 = vmatprep.subr.mxu0 0.0
    %154 = vmatpush1.msra.mxu0 0.0
    %155 = vmatprep.subr.mxu0 0.0
    %156 = vmatpush1.msra.mxu0 0.0
    %157 = vmatprep.subr.mxu0 0.0
    %158 = vmatpush1.msra.mxu0 0.0
    %159 = vmatprep.subr.mxu0 0.0
    %160 = vmatpush1.msra.mxu0 0.0
    %161 = vmatprep.subr.mxu0 0.0
    %162 = vmatpush1.msra.mxu0 0.0
    %163 = vmatprep.subr.mxu0 0.0
    %164 = vmatpush1.msra.mxu0 0.0
    %165 = vmatprep.subr.mxu0 0.0
    %166 = vmatpush1.msra.mxu0 0.0
    %167 = vmatprep.subr.mxu0 0.0
    %168 = vmatpush1.msra.mxu0 0.0
    %169 = vmatprep.subr.mxu0 0.0
    %170 = vmatpush1.msra.mxu0 0.0
    %171 = vmatprep.subr.mxu0 0.0
    %172 = vmatpush1.msra.mxu0 0.0
    %173 = vmatprep.subr.mxu0 0.0
    %174 = vmatpush1.msra.mxu0 0.0
    %175 = vmatprep.subr.mxu0 0.0
    %176 = vmatpush1.msra.mxu0 0.0
    %177 = vmatprep.subr.mxu0 0.0
    %178 = vmatpush1.msra.mxu0 0.0
    %179 = vmatprep.subr.mxu0 0.0
    %180 = vmatpush1.msra.mxu0 0.0
    %181 = vmatprep.subr.mxu0 0.0
    %182 = vmatpush1.msra.mxu0 0.0
    %183 = vmatprep.subr.mxu0 0.0
    %184 = vmatpush1.msra.mxu0 0.0
    %185 = vmatprep.subr.mxu0 0.0
    %186 = vmatpush1.msra.mxu0 0.0
    %187 = vmatprep.mubr.f32.mxu0 0.0
    %188 = vmatmul.mubr.f32.gmra.mrb[0].mxu0 %v121
    %v189 = vpop.f32.mrb[0].mxu0
    %v190 = vadd.f32 %v97, %v189
    %v191 = vpop.f32.mrb[0].mxu0
    %v192 = vadd.f32 %v101, %v191
    %193 = vdwg.mxu0
    %194 = vmatprep.subr.mxu0 %v75
    %195 = vmatpush1.msra.mxu0 %v74
    %196 = vmatprep.subr.mxu0 %v80
    %197 = vmatpush1.msra.mxu0 %v79
    %198 = vmatprep.subr.mxu0 %v85
    %199 = vmatpush1.msra.mxu0 %v84
    %200 = vmatprep.subr.mxu0 %v90
    %201 = vmatpush1.msra.mxu0 %v89
    %202 = vmatprep.subr.mxu0 0.0
    %203 = vmatpush1.msra.mxu0 0.0
    %204 = vmatprep.subr.mxu0 0.0
    %205 = vmatpush1.msra.mxu0 0.0
    %206 = vmatprep.subr.mxu0 0.0
    %207 = vmatpush1.msra.mxu0 0.0
    %208 = vmatprep.subr.mxu0 0.0
    %209 = vmatpush1.msra.mxu0 0.0
    %210 = vmatprep.subr.mxu0 0.0
    %211 = vmatpush1.msra.mxu0 0.0
    %212 = vmatprep.subr.mxu0 0.0
    %213 = vmatpush1.msra.mxu0 0.0
    %214 = vmatprep.subr.mxu0 0.0
    %215 = vmatpush1.msra.mxu0 0.0
    %216 = vmatprep.subr.mxu0 0.0
    %217 = vmatpush1.msra.mxu0 0.0
    %218 = vmatprep.subr.mxu0 0.0
    %219 = vmatpush1.msra.mxu0 0.0
    %220 = vmatprep.subr.mxu0 0.0
    %221 = vmatpush1.msra.mxu0 0.0
    %222 = vmatprep.subr.mxu0 0.0
    %223 = vmatpush1.msra.mxu0 0.0
    %224 = vmatprep.subr.mxu0 0.0
    %225 = vmatpush1.msra.mxu0 0.0
    %226 = vmatprep.subr.mxu0 0.0
    %227 = vmatpush1.msra.mxu0 0.0
    %228 = vmatprep.subr.mxu0 0.0
    %229 = vmatpush1.msra.mxu0 0.0
    %230 = vmatprep.subr.mxu0 0.0
    %231 = vmatpush1.msra.mxu0 0.0
    %232 = vmatprep.subr.mxu0 0.0
    %233 = vmatpush1.msra.mxu0 0.0
    %234 = vmatprep.subr.mxu0 0.0
    %235 = vmatpush1.msra.mxu0 0.0
    %236 = vmatprep.subr.mxu0 0.0
    %237 = vmatpush1.msra.mxu0 0.0
    %238 = vmatprep.subr.mxu0 0.0
    %239 = vmatpush1.msra.mxu0 0.0
    %240 = vmatprep.subr.mxu0 0.0
    %241 = vmatpush1.msra.mxu0 0.0
    %242 = vmatprep.subr.mxu0 0.0
    %243 = vmatpush1.msra.mxu0 0.0
    %244 = vmatprep.subr.mxu0 0.0
    %245 = vmatpush1.msra.mxu0 0.0
    %246 = vmatprep.subr.mxu0 0.0
    %247 = vmatpush1.msra.mxu0 0.0
    %248 = vmatprep.subr.mxu0 0.0
    %249 = vmatpush1.msra.mxu0 0.0
    %250 = vmatprep.subr.mxu0 0.0
    %251 = vmatpush1.msra.mxu0 0.0
    %252 = vmatprep.subr.mxu0 0.0
    %253 = vmatpush1.msra.mxu0 0.0
    %254 = vmatprep.subr.mxu0 0.0
    %255 = vmatpush1.msra.mxu0 0.0
    %256 = vmatprep.subr.mxu0 0.0
    %257 = vmatpush1.msra.mxu0 0.0
    %258 = vmatprep.mubr.f32.mxu0 0.0
    %259 = vmatmul.mubr.f32.gmra.mrb[0].mxu0 %v121
    %v260 = vpop.f32.mrb[0].mxu0
    %v261 = vadd.f32 %v105, %v260
    %v262 = vpop.f32.mrb[0].mxu0
    %v263 = vadd.f32 %v109, %v262
    %264 = vdwg.mxu0
    %265 = vmatprep.subr.mxu0 0.0
    %266 = vmatpush1.msra.mxu0 %v76
    %267 = vmatprep.subr.mxu0 0.0
    %268 = vmatpush1.msra.mxu0 %v81
    %269 = vmatprep.subr.mxu0 0.0
    %270 = vmatpush1.msra.mxu0 %v86
    %271 = vmatprep.subr.mxu0 0.0
    %272 = vmatpush1.msra.mxu0 %v91
    %273 = vmatprep.subr.mxu0 0.0
    %274 = vmatpush1.msra.mxu0 0.0
    %275 = vmatprep.subr.mxu0 0.0
    %276 = vmatpush1.msra.mxu0 0.0
    %277 = vmatprep.subr.mxu0 0.0
    %278 = vmatpush1.msra.mxu0 0.0
    %279 = vmatprep.subr.mxu0 0.0
    %280 = vmatpush1.msra.mxu0 0.0
    %281 = vmatprep.subr.mxu0 0.0
    %282 = vmatpush1.msra.mxu0 0.0
    %283 = vmatprep.subr.mxu0 0.0
    %284 = vmatpush1.msra.mxu0 0.0
    %285 = vmatprep.subr.mxu0 0.0
    %286 = vmatpush1.msra.mxu0 0.0
    %287 = vmatprep.subr.mxu0 0.0
    %288 = vmatpush1.msra.mxu0 0.0
    %289 = vmatprep.subr.mxu0 0.0
    %290 = vmatpush1.msra.mxu0 0.0
    %291 = vmatprep.subr.mxu0 0.0
    %292 = vmatpush1.msra.mxu0 0.0
    %293 = vmatprep.subr.mxu0 0.0
    %294 = vmatpush1.msra.mxu0 0.0
    %295 = vmatprep.subr.mxu0 0.0
    %296 = vmatpush1.msra.mxu0 0.0
    %297 = vmatprep.subr.mxu0 0.0
    %298 = vmatpush1.msra.mxu0 0.0
    %299 = vmatprep.subr.mxu0 0.0
    %300 = vmatpush1.msra.mxu0 0.0
    %301 = vmatprep.subr.mxu0 0.0
    %302 = vmatpush1.msra.mxu0 0.0
    %303 = vmatprep.subr.mxu0 0.0
    %304 = vmatpush1.msra.mxu0 0.0
    %305 = vmatprep.subr.mxu0 0.0
    %306 = vmatpush1.msra.mxu0 0.0
    %307 = vmatprep.subr.mxu0 0.0
    %308 = vmatpush1.msra.mxu0 0.0
    %309 = vmatprep.subr.mxu0 0.0
    %310 = vmatpush1.msra.mxu0 0.0
    %311 = vmatprep.subr.mxu0 0.0
    %312 = vmatpush1.msra.mxu0 0.0
    %313 = vmatprep.subr.mxu0 0.0
    %314 = vmatpush1.msra.mxu0 0.0
    %315 = vmatprep.subr.mxu0 0.0
    %316 = vmatpush1.msra.mxu0 0.0
    %317 = vmatprep.subr.mxu0 0.0
    %318 = vmatpush1.msra.mxu0 0.0
    %319 = vmatprep.subr.mxu0 0.0
    %320 = vmatpush1.msra.mxu0 0.0
    %321 = vmatprep.subr.mxu0 0.0
    %322 = vmatpush1.msra.mxu0 0.0
    %323 = vmatprep.subr.mxu0 0.0
    %324 = vmatpush1.msra.mxu0 0.0
    %325 = vmatprep.subr.mxu0 0.0
    %326 = vmatpush1.msra.mxu0 0.0
    %327 = vmatprep.subr.mxu0 0.0
    %328 = vmatpush1.msra.mxu0 0.0
    %329 = vmatprep.mubr.f32.mxu0 0.0
    %330 = vmatmul.mubr.f32.gmra.mrb[0].mxu0 %v121
    %v331 = vpop.f32.mrb[0].mxu0
    %v332 = vadd.f32 %v113, %v331
    %v333 = vpop.f32.mrb[0].mxu0
    %334 = vdwg.mxu0
    %v335 = vmax.f32 %v190, 0.0
    %v336 = vmax.f32 %v192, 0.0
    %v337 = vmax.f32 %v261, 0.0
    %v338 = vmax.f32 %v263, 0.0
    %v339 = vmax.f32 %v332, 0.0
    %v340 = vld [vmem:[#allocation7] sm:$0xff]
    %v341 = vld [vmem:[#allocation7 + $0x8] sm:$0xff]
    %v342 = vld [vmem:[#allocation7 + $0x10] sm:$0xff]
    %v343 = vld [vmem:[#allocation7 + $0x18] sm:$0xff]
    %v344 = vld [vmem:[#allocation7 + $0x20] sm:$0xff]
    %v345 = vld [vmem:[#allocation7 + $0x28] sm:$0xff]
    %v346 = vld [vmem:[#allocation7 + $0x30] sm:$0xff]
    %v347 = vld [vmem:[#allocation7 + $0x38] sm:$0xff]
    %v348 = vld [vmem:[#allocation7 + $0x40] sm:$0xff]
    %v349 = vld [vmem:[#allocation7 + $0x48] sm:$0xff]
    %v350 = vld [vmem:[#allocation7 + $0x50] sm:$0xff]
    %v351 = vld [vmem:[#allocation7 + $0x58] sm:$0xff]
    %v352 = vld [vmem:[#allocation7 + $0x60] sm:$0xff]
    %v353 = vld [vmem:[#allocation7 + $0x68] sm:$0xff]
    %v354 = vld [vmem:[#allocation7 + $0x70] sm:$0xff]
    %v355 = vld [vmem:[#allocation7 + $0x78] sm:$0xff]
    %v356 = vld [vmem:[#allocation7 + $0x80] sm:$0xff]
    %v357 = vld [vmem:[#allocation7 + $0x88] sm:$0xff]
    %v358 = vld [vmem:[#allocation7 + $0x90] sm:$0xff]
    %v359 = vld [vmem:[#allocation7 + $0x98] sm:$0xff]
    %v360 = vld [vmem:[#allocation7 + $0xa0] sm:$0xff]
    %v361 = vld [vmem:[#allocation7 + $0xa8] sm:$0xff]
    %v362 = vld [vmem:[#allocation7 + $0xb0] sm:$0xff]
    %v363 = vld [vmem:[#allocation7 + $0xb8] sm:$0xff]
    %v364 = vld [vmem:[#allocation7 + $0xc0] sm:$0xff]
    %v365 = vld [vmem:[#allocation7 + $0xc8] sm:$0xff]
    %v366 = vld [vmem:[#allocation7 + $0xd0] sm:$0xff]
    %v367 = vld [vmem:[#allocation7 + $0xd8] sm:$0xff]
    %v368 = vld [vmem:[#allocation7 + $0xe0] sm:$0xff]
    %v369 = vld [vmem:[#allocation7 + $0xe8] sm:$0xff]
    %v370 = vld [vmem:[#allocation7 + $0xf0] sm:$0xff]
    %v371 = vld [vmem:[#allocation7 + $0xf8] sm:$0xff]
    %v372 = vld [vmem:[#allocation7 + $0x100] sm:$0xff]
    %v373 = vld [vmem:[#allocation7 + $0x108] sm:$0xff]
    %v374 = vld [vmem:[#allocation7 + $0x110] sm:$0xff]
    %v375 = vld [vmem:[#allocation7 + $0x118] sm:$0xff]
    %v376 = vld [vmem:[#allocation7 + $0x120] sm:$0xff]
    %v377 = vld [vmem:[#allocation7 + $0x128] sm:$0xff]
    %v378 = vld [vmem:[#allocation7 + $0x130] sm:$0xff]
    %v379 = vld [vmem:[#allocation7 + $0x138] sm:$0xff]
    %v380 = vld [vmem:[#allocation7 + $0x140] sm:$0xff]
    %v381 = vld [vmem:[#allocation7 + $0x148] sm:$0xff]
    %v382 = vld [vmem:[#allocation7 + $0x150] sm:$0xff]
    %v383 = vld [vmem:[#allocation7 + $0x158] sm:$0xff]
    %v384 = vld [vmem:[#allocation7 + $0x160] sm:$0xff]
    %v385 = vld [vmem:[#allocation7 + $0x168] sm:$0xff]
    %v386 = vld [vmem:[#allocation7 + $0x170] sm:$0xff]
    %v387 = vld [vmem:[#allocation7 + $0x178] sm:$0xff]
    %v388 = vld [vmem:[#allocation7 + $0x180] sm:$0xff]
    %v389 = vld [vmem:[#allocation7 + $0x188] sm:$0xff]
    %v390 = vld [vmem:[#allocation7 + $0x190] sm:$0xff]
    %v391 = vld [vmem:[#allocation7 + $0x198] sm:$0xff]
    %v392 = vld [vmem:[#allocation7 + $0x1a0] sm:$0xff]
    %v393 = vld [vmem:[#allocation7 + $0x1a8] sm:$0xff]
    %v394 = vld [vmem:[#allocation7 + $0x1b0] sm:$0xff]
    %v395 = vld [vmem:[#allocation7 + $0x1b8] sm:$0xff]
    %v396 = vld [vmem:[#allocation7 + $0x1c0] sm:$0xff]
    %v397 = vld [vmem:[#allocation7 + $0x1c8] sm:$0xff]
    %v398 = vld [vmem:[#allocation7 + $0x1d0] sm:$0xff]
    %v399 = vld [vmem:[#allocation7 + $0x1d8] sm:$0xff]
    %v400 = vld [vmem:[#allocation7 + $0x1e0] sm:$0xff]
    %v401 = vld [vmem:[#allocation7 + $0x1e8] sm:$0xff]
    %v402 = vld [vmem:[#allocation7 + $0x1f0] sm:$0xff]
    %v403 = vld [vmem:[#allocation7 + $0x1f8] sm:$0xff]
    %v404 = vld [vmem:[#allocation7 + $0x200] sm:$0xff]
    %v405 = vld [vmem:[#allocation7 + $0x208] sm:$0xff]
    %v406 = vld [vmem:[#allocation7 + $0x210] sm:$0xff]
    %v407 = vld [vmem:[#allocation7 + $0x218] sm:$0xff]
    %v408 = vld [vmem:[#allocation7 + $0x220] sm:$0xff]
    %v409 = vld [vmem:[#allocation7 + $0x228] sm:$0xff]
    %v410 = vld [vmem:[#allocation7 + $0x230] sm:$0xff]
    %v411 = vld [vmem:[#allocation7 + $0x238] sm:$0xff]
    %v412 = vld [vmem:[#allocation7 + $0x240] sm:$0xff]
    %v413 = vld [vmem:[#allocation7 + $0x248] sm:$0xff]
    %v414 = vld [vmem:[#allocation7 + $0x250] sm:$0xff]
    %v415 = vld [vmem:[#allocation7 + $0x258] sm:$0xff]
    %v416 = vld [vmem:[#allocation7 + $0x260] sm:$0xff]
    %v417 = vld [vmem:[#allocation7 + $0x268] sm:$0xff]
    %v418 = vld [vmem:[#allocation7 + $0x270] sm:$0xff]
    %v419 = vld [vmem:[#allocation7 + $0x278] sm:$0xff]
    %v420 = vld [vmem:[%s4] sm:$0x1]
    %v422 = vlaneseq
    %v423 = vshrl.u32 %v422, 7
    %v424 = vsub.s32 0, %v423
    %v425 = vrot.slane %v420, %v424
    %427 = vmatprep.subr.mxu0 0.0
    %428 = vmatpush1.msra.mxu0 %v340
    %429 = vmatprep.subr.mxu0 0.0
    %430 = vmatpush1.msra.mxu0 %v341
    %431 = vmatprep.subr.mxu0 0.0
    %432 = vmatpush1.msra.mxu0 %v342
    %433 = vmatprep.subr.mxu0 0.0
    %434 = vmatpush1.msra.mxu0 %v343
    %435 = vmatprep.subr.mxu0 0.0
    %436 = vmatpush1.msra.mxu0 %v344
    %437 = vmatprep.subr.mxu0 0.0
    %438 = vmatpush1.msra.mxu0 %v345
    %439 = vmatprep.subr.mxu0 0.0
    %440 = vmatpush1.msra.mxu0 %v346
    %441 = vmatprep.subr.mxu0 0.0
    %442 = vmatpush1.msra.mxu0 %v347
    %443 = vmatprep.subr.mxu0 0.0
    %444 = vmatpush1.msra.mxu0 %v348
    %445 = vmatprep.subr.mxu0 0.0
    %446 = vmatpush1.msra.mxu0 %v349
    %447 = vmatprep.subr.mxu0 0.0
    %448 = vmatpush1.msra.mxu0 %v350
    %449 = vmatprep.subr.mxu0 0.0
    %450 = vmatpush1.msra.mxu0 %v351
    %451 = vmatprep.subr.mxu0 0.0
    %452 = vmatpush1.msra.mxu0 %v352
    %453 = vmatprep.subr.mxu0 0.0
    %454 = vmatpush1.msra.mxu0 %v353
    %455 = vmatprep.subr.mxu0 0.0
    %456 = vmatpush1.msra.mxu0 %v354
    %457 = vmatprep.subr.mxu0 0.0
    %458 = vmatpush1.msra.mxu0 %v355
    %459 = vmatprep.subr.mxu0 0.0
    %460 = vmatpush1.msra.mxu0 %v356
    %461 = vmatprep.subr.mxu0 0.0
    %462 = vmatpush1.msra.mxu0 %v357
    %463 = vmatprep.subr.mxu0 0.0
    %464 = vmatpush1.msra.mxu0 %v358
    %465 = vmatprep.subr.mxu0 0.0
    %466 = vmatpush1.msra.mxu0 %v359
    %467 = vmatprep.subr.mxu0 0.0
    %468 = vmatpush1.msra.mxu0 %v360
    %469 = vmatprep.subr.mxu0 0.0
    %470 = vmatpush1.msra.mxu0 %v361
    %471 = vmatprep.subr.mxu0 0.0
    %472 = vmatpush1.msra.mxu0 %v362
    %473 = vmatprep.subr.mxu0 0.0
    %474 = vmatpush1.msra.mxu0 %v363
    %475 = vmatprep.subr.mxu0 0.0
    %476 = vmatpush1.msra.mxu0 %v364
    %477 = vmatprep.subr.mxu0 0.0
    %478 = vmatpush1.msra.mxu0 %v365
    %479 = vmatprep.subr.mxu0 0.0
    %480 = vmatpush1.msra.mxu0 %v366
    %481 = vmatprep.subr.mxu0 0.0
    %482 = vmatpush1.msra.mxu0 %v367
    %483 = vmatprep.subr.mxu0 0.0
    %484 = vmatpush1.msra.mxu0 %v368
    %485 = vmatprep.subr.mxu0 0.0
    %486 = vmatpush1.msra.mxu0 %v369
    %487 = vmatprep.subr.mxu0 0.0
    %488 = vmatpush1.msra.mxu0 %v370
    %489 = vmatprep.subr.mxu0 0.0
    %490 = vmatpush1.msra.mxu0 %v371
    %491 = vmatprep.mubr.f32.mxu0 %v336
    %492 = vmatmul.mubr.f32.gmra.mrb[0].mxu0 %v335
    %v493 = vpop.f32.mrb[0].mxu0
    %v494 = vadd.f32 %v425, %v493
    %v495 = vpop.f32.mrb[0].mxu0
    %496 = vdwg.mxu0
    %497 = vmatprep.subr.mxu0 0.0
    %498 = vmatpush1.msra.mxu0 %v372
    %499 = vmatprep.subr.mxu0 0.0
    %500 = vmatpush1.msra.mxu0 %v373
    %501 = vmatprep.subr.mxu0 0.0
    %502 = vmatpush1.msra.mxu0 %v374
    %503 = vmatprep.subr.mxu0 0.0
    %504 = vmatpush1.msra.mxu0 %v375
    %505 = vmatprep.subr.mxu0 0.0
    %506 = vmatpush1.msra.mxu0 %v376
    %507 = vmatprep.subr.mxu0 0.0
    %508 = vmatpush1.msra.mxu0 %v377
    %509 = vmatprep.subr.mxu0 0.0
    %510 = vmatpush1.msra.mxu0 %v378
    %511 = vmatprep.subr.mxu0 0.0
    %512 = vmatpush1.msra.mxu0 %v379
    %513 = vmatprep.subr.mxu0 0.0
    %514 = vmatpush1.msra.mxu0 %v380
    %515 = vmatprep.subr.mxu0 0.0
    %516 = vmatpush1.msra.mxu0 %v381
    %517 = vmatprep.subr.mxu0 0.0
    %518 = vmatpush1.msra.mxu0 %v382
    %519 = vmatprep.subr.mxu0 0.0
    %520 = vmatpush1.msra.mxu0 %v383
    %521 = vmatprep.subr.mxu0 0.0
    %522 = vmatpush1.msra.mxu0 %v384
    %523 = vmatprep.subr.mxu0 0.0
    %524 = vmatpush1.msra.mxu0 %v385
    %525 = vmatprep.subr.mxu0 0.0
    %526 = vmatpush1.msra.mxu0 %v386
    %527 = vmatprep.subr.mxu0 0.0
    %528 = vmatpush1.msra.mxu0 %v387
    %529 = vmatprep.subr.mxu0 0.0
    %530 = vmatpush1.msra.mxu0 %v388
    %531 = vmatprep.subr.mxu0 0.0
    %532 = vmatpush1.msra.mxu0 %v389
    %533 = vmatprep.subr.mxu0 0.0
    %534 = vmatpush1.msra.mxu0 %v390
    %535 = vmatprep.subr.mxu0 0.0
    %536 = vmatpush1.msra.mxu0 %v391
    %537 = vmatprep.subr.mxu0 0.0
    %538 = vmatpush1.msra.mxu0 %v392
    %539 = vmatprep.subr.mxu0 0.0
    %540 = vmatpush1.msra.mxu0 %v393
    %541 = vmatprep.subr.mxu0 0.0
    %542 = vmatpush1.msra.mxu0 %v394
    %543 = vmatprep.subr.mxu0 0.0
    %544 = vmatpush1.msra.mxu0 %v395
    %545 = vmatprep.subr.mxu0 0.0
    %546 = vmatpush1.msra.mxu0 %v396
    %547 = vmatprep.subr.mxu0 0.0
    %548 = vmatpush1.msra.mxu0 %v397
    %549 = vmatprep.subr.mxu0 0.0
    %550 = vmatpush1.msra.mxu0 %v398
    %551 = vmatprep.subr.mxu0 0.0
    %552 = vmatpush1.msra.mxu0 %v399
    %553 = vmatprep.subr.mxu0 0.0
    %554 = vmatpush1.msra.mxu0 %v400
    %555 = vmatprep.subr.mxu0 0.0
    %556 = vmatpush1.msra.mxu0 %v401
    %557 = vmatprep.subr.mxu0 0.0
    %558 = vmatpush1.msra.mxu0 %v402
    %559 = vmatprep.subr.mxu0 0.0
    %560 = vmatpush1.msra.mxu0 %v403
    %561 = vmatprep.mubr.f32.mxu0 %v338
    %562 = vmatmul.mubr.f32.gmra.mrb[0].mxu0 %v337
    %v563 = vpop.f32.mrb[0].mxu0
    %v564 = vadd.f32 %v494, %v563
    %v565 = vpop.f32.mrb[0].mxu0
    %566 = vdwg.mxu0
    %567 = vmatprep.subr.mxu0 0.0
    %568 = vmatpush1.msra.mxu0 %v404
    %569 = vmatprep.subr.mxu0 0.0
    %570 = vmatpush1.msra.mxu0 %v405
    %571 = vmatprep.subr.mxu0 0.0
    %572 = vmatpush1.msra.mxu0 %v406
    %573 = vmatprep.subr.mxu0 0.0
    %574 = vmatpush1.msra.mxu0 %v407
    %575 = vmatprep.subr.mxu0 0.0
    %576 = vmatpush1.msra.mxu0 %v408
    %577 = vmatprep.subr.mxu0 0.0
    %578 = vmatpush1.msra.mxu0 %v409
    %579 = vmatprep.subr.mxu0 0.0
    %580 = vmatpush1.msra.mxu0 %v410
    %581 = vmatprep.subr.mxu0 0.0
    %582 = vmatpush1.msra.mxu0 %v411
    %583 = vmatprep.subr.mxu0 0.0
    %584 = vmatpush1.msra.mxu0 %v412
    %585 = vmatprep.subr.mxu0 0.0
    %586 = vmatpush1.msra.mxu0 %v413
    %587 = vmatprep.subr.mxu0 0.0
    %588 = vmatpush1.msra.mxu0 %v414
    %589 = vmatprep.subr.mxu0 0.0
    %590 = vmatpush1.msra.mxu0 %v415
    %591 = vmatprep.subr.mxu0 0.0
    %592 = vmatpush1.msra.mxu0 %v416
    %593 = vmatprep.subr.mxu0 0.0
    %594 = vmatpush1.msra.mxu0 %v417
    %595 = vmatprep.subr.mxu0 0.0
    %596 = vmatpush1.msra.mxu0 %v418
    %597 = vmatprep.subr.mxu0 0.0
    %598 = vmatpush1.msra.mxu0 %v419
    %599 = vmatprep.subr.mxu0 0.0
    %600 = vmatpush1.msra.mxu0 0.0
    %601 = vmatprep.subr.mxu0 0.0
    %602 = vmatpush1.msra.mxu0 0.0
    %603 = vmatprep.subr.mxu0 0.0
    %604 = vmatpush1.msra.mxu0 0.0
    %605 = vmatprep.subr.mxu0 0.0
    %606 = vmatpush1.msra.mxu0 0.0
    %607 = vmatprep.subr.mxu0 0.0
    %608 = vmatpush1.msra.mxu0 0.0
    %609 = vmatprep.subr.mxu0 0.0
    %610 = vmatpush1.msra.mxu0 0.0
    %611 = vmatprep.subr.mxu0 0.0
    %612 = vmatpush1.msra.mxu0 0.0
    %613 = vmatprep.subr.mxu0 0.0
    %614 = vmatpush1.msra.mxu0 0.0
    %615 = vmatprep.subr.mxu0 0.0
    %616 = vmatpush1.msra.mxu0 0.0
    %617 = vmatprep.subr.mxu0 0.0
    %618 = vmatpush1.msra.mxu0 0.0
    %619 = vmatprep.subr.mxu0 0.0
    %620 = vmatpush1.msra.mxu0 0.0
    %621 = vmatprep.subr.mxu0 0.0
    %622 = vmatpush1.msra.mxu0 0.0
    %623 = vmatprep.subr.mxu0 0.0
    %624 = vmatpush1.msra.mxu0 0.0
    %625 = vmatprep.subr.mxu0 0.0
    %626 = vmatpush1.msra.mxu0 0.0
    %627 = vmatprep.subr.mxu0 0.0
    %628 = vmatpush1.msra.mxu0 0.0
    %629 = vmatprep.subr.mxu0 0.0
    %630 = vmatpush1.msra.mxu0 0.0
    %631 = vmatprep.mubr.f32.mxu0 0.0
    %632 = vmatmul.mubr.f32.gmra.mrb[0].mxu0 %v339
    %v633 = vpop.f32.mrb[0].mxu0
    %v634 = vadd.f32 %v564, %v633
    %v635 = vpop.f32.mrb[0].mxu0
    %636 = vdwg.mxu0
    %637 = vst [vmem:[%s5] sm:$0xff] %v634
    // Predicated region
    $region38: #{polarity_classifier_forward.1} parent=1 // pred_check
      _
    $region39: #{polarity_classifier_forward.1} parent=1 // pred_check_branch
      %639 = sbr.rel (0) target = $region41
    $region40: #{polarity_classifier_forward.1} parent=1 // pred_region
      _
    $region41: #{polarity_classifier_forward.1} parent=1 // pred_fallthru
      _
    // Predicated region
    $region42: #{polarity_classifier_forward.1} parent=1 // pred_check
      _
    $region43: #{polarity_classifier_forward.1} parent=1 // pred_check_branch
      %641 = sbr.rel (0) target = $region45
    $region44: #{polarity_classifier_forward.1} parent=1 // pred_region
      _
    $region45: #{polarity_classifier_forward.1} parent=1 // pred_fallthru
      _
    %642 = vsyncpa [#allocation3], 1
    %643 = vsyncpa [#allocation5], 1
    %644 = vsyncpa [#allocation8], 1

</llo_original>
